<compile_context>
chip_gen: v7x
topology: tpu7x:2x2x1
jax: 0.10.0
libtpu: 0.0.40
codegen_flags: <defaults>
</compile_context>

<pallas_src>
import math
import numpy as np

import jax
import jax.numpy as jnp
from jax import lax
from jax.experimental import pallas as pl
from jax.experimental.pallas import tpu as pltpu


def kpe_kernel(scal_ref, params_ref, o_ref):
    """scal_ref  : SMEM (1,)  = [b2]
       params_ref: VMEM [H, 4] = columns (slope | intercept | w2 | alpha*w2)
       o_ref     : VMEM [1, tile] lane-dense output row for this tile."""
    tile = o_ref.shape[1]
    start = pl.program_id(0) * tile

    # Positions for this tile, generated once at [1, tile] (one vreg row per
    # 128 lanes) and broadcast against the [H, 1] params below.
    pos = (start + lax.broadcasted_iota(jnp.int32, (1, tile), 1)).astype(jnp.float32)

    slope = params_ref[:, 0:1]       # [H, 1]
    intercept = params_ref[:, 1:2]   # [H, 1]
    w2_pos = params_ref[:, 2:3]      # [H, 1]  = w2
    w2_neg = params_ref[:, 3:4]      # [H, 1]  = alpha * w2

    # Layer 1 (folded): one broadcasted multiply-add on the VPU.
    h = slope * pos + intercept                       # [H, tile]
    # PReLU + layer-2 weight fused into a single select.
    w = jnp.where(h >= 0, w2_pos, w2_neg)             # [H, tile]
    # Layer 2: weighted reduction over H (sublane reduce -> XLU), then + b2.
    o = jnp.sum(w * h, axis=0, keepdims=True)         # [1, tile]
    o_ref[...] = o + scal_ref[0]


def _choose_tiling(L, H):
    """Pick (tile, num_tiles): one big block for realistic L, capped so an
    [H, tile] f32 temporary stays ~<=512 KiB (keeps intermediates in vregs)."""
    lp128 = ((L + 127) // 128) * 128
    cap = max(128, min(4096, ((512 * 1024) // (4 * H)) // 128 * 128))
    if lp128 <= cap:
        return lp128, 1
    tile = cap
    num_tiles = -(-lp128 // tile)
    return tile, num_tiles


def kpe_forward(L, context_last, target_start, w1, b1, w2, b2, alpha):
    """w1: [2, H], b1: [H], w2: [H], b2: scalar, alpha: scalar -> [L, 1]."""
    H = w1.shape[1]
    c = jnp.float32(context_last)
    t = jnp.float32(target_start)

    # Fold the first linear into an affine function of the position index,
    # and fold the PReLU alpha into a second copy of the output weights.
    slope = w1[0] + w1[1]                              # [H]
    intercept = b1 - w1[0] * c - w1[1] * t             # [H]
    params = jnp.stack([slope, intercept, w2, alpha * w2], axis=1).astype(jnp.float32)  # [H, 4]
    scal = jnp.asarray(b2, dtype=jnp.float32).reshape(1)                                # (1,)

    tile, num_tiles = _choose_tiling(L, H)
    Lp = tile * num_tiles

    out_row = pl.pallas_call(
        kpe_kernel,
        out_shape=jax.ShapeDtypeStruct((1, Lp), jnp.float32),
        grid_spec=pltpu.PrefetchScalarGridSpec(
            num_scalar_prefetch=1,                      # scal (b2) -> SMEM
            grid=(num_tiles,),                          # usually (1,)
            in_specs=[
                # Constant [H, 4] table; with grid=(1,) it is DMA'd exactly once.
                pl.BlockSpec((H, 4), lambda i, scal: (0, 0)),
            ],
            out_specs=pl.BlockSpec((1, tile), lambda i, scal: (0, i)),
        ),
        compiler_params=pltpu.CompilerParams(
            # Single-core: megacore splitting loses for a us-scale kernel.
            dimension_semantics=("arbitrary",),
        ),
    )(scal, params)

    # Drop lane padding (padded lanes hold finite garbage) and restore the
    # module's [L, 1] output layout.
    return out_row[0, :L].reshape(L, 1)


def keyframe_bounds(mask_np):
    """Host-side glue replicating the module's __init__ index math."""
    zero_idx = np.nonzero(mask_np[0] == 0)[0]
    assert zero_idx.size > 0, "mask must contain a zero (keyframe) span"
    # TODO(synk): like the PyTorch code, a non-contiguous zero span silently
    # uses only the first/last zero index.
    return int(zero_idx[0]) - 1, int(zero_idx[-1]) + 1


def init_params(key, hidden_dim):
    """Deterministic init mimicking PyTorch Linear defaults (uniform +-1/sqrt(fan_in))."""
    k1, k2, k3, k4 = jax.random.split(key, 4)
    bound1 = 1.0 / math.sqrt(2.0)
    bound2 = 1.0 / math.sqrt(hidden_dim)
    w1 = jax.random.uniform(k1, (2, hidden_dim), jnp.float32, -bound1, bound1)
    b1 = jax.random.uniform(k2, (hidden_dim,), jnp.float32, -bound1, bound1)
    w2 = jax.random.uniform(k3, (hidden_dim,), jnp.float32, -bound2, bound2)
    b2 = jax.random.uniform(k4, (), jnp.float32, -bound2, bound2)
    alpha = jnp.float32(0.25)  # nn.PReLU default
    return w1, b1, w2, b2, alpha


def reference_forward(L, context_last, target_start, w1, b1, w2, b2, alpha):
    """Pure-JAX reference in the original (unfolded) formulation."""
    pos = jnp.arange(L, dtype=jnp.float32)
    rp = jnp.stack([pos - context_last, pos - target_start], axis=1)  # [L, 2]
    h = rp @ w1 + b1
    h = jnp.where(h >= 0, h, alpha * h)
    return (h @ w2 + b2).reshape(L, 1)


if __name__ == "__main__":
    hidden_dim = 32
    w1, b1, w2, b2, alpha = init_params(jax.random.PRNGKey(0), hidden_dim)

    # Cases: single-tile small (L=16), single-tile with padding (L=300),
    # and multi-tile fallback (L=5000 > 4096-lane cap at H=32).
    for L, (z0, z1) in [(16, (6, 10)), (300, (100, 150)), (5000, (2000, 2100))]:
        mask_np = np.ones((1, L), dtype=np.float32)
        mask_np[0, z0:z1] = 0.0
        context_last, target_start = keyframe_bounds(mask_np)

        out = kpe_forward(L, context_last, target_start, w1, b1, w2, b2, alpha)
        out = jax.block_until_ready(out)

        ref = reference_forward(L, context_last, target_start, w1, b1, w2, b2, alpha)
        # slightly loose tolerance: the layer-1 / alpha folding reassociates f32 math
        np.testing.assert_allclose(np.asarray(out), np.asarray(ref),
                                   rtol=1e-4, atol=1e-4)
        assert out.shape == (L, 1)

    print("KERNEL_OK")
</pallas_src>

<mosaic_0001>
module attributes {stable_mosaic.version = 11 : i64} {
  func.func @kpe_kernel(%arg0: i32, %arg1: memref<1xf32, #tpu.memory_space<smem>>, %arg2: memref<32x4xf32, #tpu.memory_space<vmem>>, %arg3: memref<1x128xf32, #tpu.memory_space<vmem>>) attributes {dimension_semantics = [#tpu.dimension_semantics<arbitrary>], iteration_bounds = array<i64: 1>, scalar_prefetch = 1 : i64, scratch_operands = 0 : i64, tpu.core_type = #tpu.core_type<tc>, window_params = [{pipeline_mode = #tpu.pipeline_mode<synchronous>, transform_indices = @transform_0, window_bounds = array<i64: 32, 4>}, {transform_indices = @transform_1, window_bounds = array<i64: 1, 128>}]} {
    %c128_i32 = arith.constant 128 : i32
    %0 = arith.muli %arg0, %c128_i32 : i32
    %1 = tpu.iota {dimensions = array<i32: 1>} : vector<1x128xi32>
    %2 = vector.broadcast %0 : i32 to vector<1x128xi32>
    %3 = arith.addi %2, %1 : vector<1x128xi32>
    %4 = arith.sitofp %3 : vector<1x128xi32> to vector<1x128xf32>
    %c0 = arith.constant 0 : index
    %c0_0 = arith.constant 0 : index
    %5 = vector.load %arg2[%c0, %c0_0] : memref<32x4xf32, #tpu.memory_space<vmem>>, vector<32x1xf32>
    %c0_1 = arith.constant 0 : index
    %c1 = arith.constant 1 : index
    %6 = vector.load %arg2[%c0_1, %c1] : memref<32x4xf32, #tpu.memory_space<vmem>>, vector<32x1xf32>
    %c0_2 = arith.constant 0 : index
    %c2 = arith.constant 2 : index
    %7 = vector.load %arg2[%c0_2, %c2] : memref<32x4xf32, #tpu.memory_space<vmem>>, vector<32x1xf32>
    %c0_3 = arith.constant 0 : index
    %c3 = arith.constant 3 : index
    %8 = vector.load %arg2[%c0_3, %c3] : memref<32x4xf32, #tpu.memory_space<vmem>>, vector<32x1xf32>
    %9 = vector.broadcast %5 : vector<32x1xf32> to vector<32x128xf32>
    %10 = vector.broadcast %4 : vector<1x128xf32> to vector<32x128xf32>
    %11 = arith.mulf %9, %10 : vector<32x128xf32>
    %12 = vector.broadcast %6 : vector<32x1xf32> to vector<32x128xf32>
    %13 = arith.addf %11, %12 : vector<32x128xf32>
    %cst = arith.constant 0.000000e+00 : f32
    %14 = vector.broadcast %cst : f32 to vector<32x128xf32>
    %15 = arith.cmpf oge, %13, %14 : vector<32x128xf32>
    %16 = vector.shape_cast %7 : vector<32x1xf32> to vector<32x1xf32>
    %17 = vector.broadcast %16 : vector<32x1xf32> to vector<32x128xf32>
    %18 = vector.shape_cast %8 : vector<32x1xf32> to vector<32x1xf32>
    %19 = vector.broadcast %18 : vector<32x1xf32> to vector<32x128xf32>
    %20 = arith.select %15, %17, %19 : vector<32x128xi1>, vector<32x128xf32>
    %21 = arith.mulf %20, %13 : vector<32x128xf32>
    %cst_4 = arith.constant dense<0.000000e+00> : vector<128xf32>
    %22 = vector.multi_reduction <add>, %21, %cst_4 [0] : vector<32x128xf32> to vector<128xf32>
    %23 = vector.shape_cast %22 : vector<128xf32> to vector<1x128xf32>
    %c0_5 = arith.constant 0 : index
    %24 = memref.load %arg1[%c0_5] : memref<1xf32, #tpu.memory_space<smem>>
    %25 = vector.broadcast %24 : f32 to vector<1x128xf32>
    %26 = arith.addf %23, %25 : vector<1x128xf32>
    %c0_6 = arith.constant 0 : index
    %c0_7 = arith.constant 0 : index
    %27 = vector.load %arg3[%c0_6, %c0_7] : memref<1x128xf32, #tpu.memory_space<vmem>>, vector<1x128xf32>
    tpu.vector_store %arg3[%c0_6, %c0_7], %26 {strides = array<i32>} : memref<1x128xf32, #tpu.memory_space<vmem>>, vector<1x128xf32>,
    return
  }
  func.func @transform_0(%arg0: i32, %arg1: memref<1xf32, #tpu.memory_space<smem>>) -> (i32, i32) {
    %c0_i32 = arith.constant 0 : i32
    %c0_i32_0 = arith.constant 0 : i32
    %c0_i32_1 = arith.constant 0 : i32
    return %c0_i32, %c0_i32_0 : i32, i32
  }
  func.func @transform_1(%arg0: i32, %arg1: memref<1xf32, #tpu.memory_space<smem>>) -> (i32, i32) {
    %c0_i32 = arith.constant 0 : i32
    %c0_i32_0 = arith.constant 0 : i32
    return %c0_i32, %arg0 : i32, i32
  }
}

</mosaic_0001>

<llo_original>
// kernel: tpu_custom_call.1
$region0: #{tpu_custom_call.1}
  #allocation0 [shape = 'u32[]', space=smem, size = 0x4, offset = 0x4, fixed_abs, tag = 'smem constant byte address 0x4 - core index']
  #allocation1 [shape = 'u32[144,128]{1,0:T(1,128)}', space=vmem, size = 0x12000, scoped, tag = 'internal scratch']
  #allocation2 [shape = 's32[1]{0}', space=sflag, size = 0x4, scoped, tag = 'scoped memory for tpu_custom_call.1']
  #allocation3 [shape = 'f32[1]{0:T(128)S(6)}', space=smem, size = 0x200, scoped, tag = 'prefetched SMEM operand 0']
  %s0 = inlined_call_operand.<no memory space> [shape: f32[1], index: 0, kind: input, shape index: {}]
  %s1 = inlined_call_operand.vmem [shape: f32[32,4], index: 1, kind: input, shape index: {}]
  %s2 = inlined_call_operand.hbm [shape: f32[1,128], index: 2, kind: output, shape index: {}]
  %s3 = sld [smem:[#allocation0]]
  $region14: #{tpu_custom_call.1} parent=0
    _
  %s5 = ssub.s32 1, %s3
  %s6 = scalar_select 0, %s5, %s3
  %7 = sst [smem:[#allocation3]] %s0
  $region1: #{tpu_custom_call.1} parent=0
    #allocation4 [shape = 'u8[512]{0}', space=vmem, size = 0x400, scoped, tag = 'output window, operand 0, single buffered']
    #allocation5 [shape = 's32[1]{0}', space=sflag, size = 0x4, scoped, tag = 'scoped memory for tpu_custom_call.1']
    %8 = vsyncpa [#allocation5], 0
    // Predicated region
    $region2: #{tpu_custom_call.1} parent=1 // pred_check
      _
    $region3: #{tpu_custom_call.1} parent=1 // pred_check_branch
      %10 = sbr.rel (0) target = $region5
    $region4: #{tpu_custom_call.1} parent=1 // pred_region
      _
    $region5: #{tpu_custom_call.1} parent=1 // pred_fallthru
      _
    %s11 = smul.u32 0, 128
    %v12 = vlaneseq
    %v13 = vand.u32 %v12, 127
    %v14 = vstv %s11
    %v15 = vadd.s32 %v14, %v13
    %v16 = vcvt.s32.f32 %v15
    %v17 = vld [vmem:[%s1] sm:$0xff]
    %v18 = vld [vmem:[%s1 + $0x8] sm:$0xff]
    %v19 = vld [vmem:[%s1 + $0x10] sm:$0xff]
    %v20 = vld [vmem:[%s1 + $0x18] sm:$0xff]
    %22 = vset.pattern.permute.xlu0 0
    %23 = vperm.xlu0 %22, %v17
    %v24 = vpop.permute.xlu0 %23
    %27 = vset.pattern.permute.xlu0 0
    %28 = vperm.xlu0 %27, %v18
    %v29 = vpop.permute.xlu0 %28
    %32 = vset.pattern.permute.xlu0 0
    %33 = vperm.xlu0 %32, %v19
    %v34 = vpop.permute.xlu0 %33
    %37 = vset.pattern.permute.xlu0 0
    %38 = vperm.xlu0 %37, %v20
    %v39 = vpop.permute.xlu0 %38
    %v41 = vmul.f32 %v24, %v16
    %v42 = vmul.f32 %v29, %v16
    %v43 = vmul.f32 %v34, %v16
    %v44 = vmul.f32 %v39, %v16
    %45 = vset.pattern.permute.xlu0 1
    %46 = vperm.xlu0 %45, %v17
    %v47 = vpop.permute.xlu0 %46
    %49 = vset.pattern.permute.xlu0 1
    %50 = vperm.xlu0 %49, %v18
    %v51 = vpop.permute.xlu0 %50
    %53 = vset.pattern.permute.xlu0 1
    %54 = vperm.xlu0 %53, %v19
    %v55 = vpop.permute.xlu0 %54
    %57 = vset.pattern.permute.xlu0 1
    %58 = vperm.xlu0 %57, %v20
    %v59 = vpop.permute.xlu0 %58
    %v61 = vadd.f32 %v41, %v47
    %v62 = vadd.f32 %v42, %v51
    %v63 = vadd.f32 %v43, %v55
    %v64 = vadd.f32 %v44, %v59
    %vm65 = vcmp.ge.f32.partialorder %v61, 0.0
    %vm66 = vcmp.ge.f32.partialorder %v62, 0.0
    %vm67 = vcmp.ge.f32.partialorder %v63, 0.0
    %vm68 = vcmp.ge.f32.partialorder %v64, 0.0
    %69 = vset.pattern.permute.xlu0 2
    %70 = vperm.xlu0 %69, %v17
    %v71 = vpop.permute.xlu0 %70
    %73 = vset.pattern.permute.xlu0 2
    %74 = vperm.xlu0 %73, %v18
    %v75 = vpop.permute.xlu0 %74
    %77 = vset.pattern.permute.xlu0 2
    %78 = vperm.xlu0 %77, %v19
    %v79 = vpop.permute.xlu0 %78
    %81 = vset.pattern.permute.xlu0 2
    %82 = vperm.xlu0 %81, %v20
    %v83 = vpop.permute.xlu0 %82
    %85 = vset.pattern.permute.xlu0 3
    %86 = vperm.xlu0 %85, %v17
    %v87 = vpop.permute.xlu0 %86
    %89 = vset.pattern.permute.xlu0 3
    %90 = vperm.xlu0 %89, %v18
    %v91 = vpop.permute.xlu0 %90
    %93 = vset.pattern.permute.xlu0 3
    %94 = vperm.xlu0 %93, %v19
    %v95 = vpop.permute.xlu0 %94
    %97 = vset.pattern.permute.xlu0 3
    %98 = vperm.xlu0 %97, %v20
    %v99 = vpop.permute.xlu0 %98
    %v101 = vsel %vm65, %v71, %v87
    %v102 = vsel %vm66, %v75, %v91
    %v103 = vsel %vm67, %v79, %v95
    %v104 = vsel %vm68, %v83, %v99
    %v105 = vmul.f32 %v101, %v61
    %v106 = vmul.f32 %v102, %v62
    %v107 = vmul.f32 %v103, %v63
    %v108 = vmul.f32 %v104, %v64
    %v109 = vadd.f32 %v105, %v106
    %v110 = vadd.f32 %v109, %v107
    %v111 = vadd.f32 %v110, %v108
    %v112 = vrot.slane %v111, 4
    %v113 = vadd.f32 %v111, %v112
    %v114 = vrot.slane %v113, 2
    %v115 = vadd.f32 %v113, %v114
    %v116 = vrot.slane %v115, 1
    %v117 = vadd.f32 %v115, %v116
    %s118 = sld [smem:[#allocation3]]
    %v119 = vstv %s118
    %v120 = vadd.f32 %v117, %v119
    %121 = vst [vmem:[#allocation4] sm:$0x1] %v120
    // Predicated region
    $region6: #{tpu_custom_call.1} parent=1 // pred_check
      _
    $region7: #{tpu_custom_call.1} parent=1 // pred_check_branch
      %123 = sbr.rel (0) target = $region9
    $region8: #{tpu_custom_call.1} parent=1 // pred_region
      %s125 = ssub.s32 16, 16
      %126 = vsyncadd [#allocation5], %s125
      %s128 = sshll.u32 [#allocation4], 4
      %s129 = int_to_ptr.vmem [resolvable:$true] %s128
      %131 = dma.vmem_to_hbm [thread:$0]  %s129, 16, %s2, [#allocation5]
    $region9: #{tpu_custom_call.1} parent=1 // pred_fallthru
      _
    // Predicated region
    $region10: #{tpu_custom_call.1} parent=1 // pred_check
      _
    $region11: #{tpu_custom_call.1} parent=1 // pred_check_branch
      %133 = sbr.rel (0) target = $region13
    $region12: #{tpu_custom_call.1} parent=1 // pred_region
      %134 = dma.done [#allocation5], 16
    $region13: #{tpu_custom_call.1} parent=1 // pred_fallthru
      _
    %135 = vsyncpa [#allocation5], 1

</llo_original>
